<compile_context>
chip_gen: v6e
topology: v6e:2x2x1
jax: 0.10.0
libtpu: 0.0.40
codegen_flags: <defaults>
</compile_context>

<pallas_src>
import functools

import jax
import jax.numpy as jnp
from jax.experimental import pallas as pl
from jax.experimental.pallas import tpu as pltpu


# ---------------------------------------------------------------------------
# Generation-aware VMEM budgeting
# ---------------------------------------------------------------------------

@functools.lru_cache(maxsize=None)
def _vmem_capacity_bytes():
    """Physical VMEM per TensorCore (128 MiB on v5e/v6e, 64 MiB on v7x)."""
    try:
        info = pltpu.get_tpu_info()
        cap = getattr(info, "vmem_capacity_bytes", None)
        if cap:
            return int(cap)
    except Exception:
        pass
    return 64 * 1024 * 1024   # conservative default (v7x per-TC VMEM)


def _round_up(v, m):
    return ((v + m - 1) // m) * m


# ---------------------------------------------------------------------------
# Pallas kernels
# ---------------------------------------------------------------------------

def _se_fused_kernel(x_ref, r_ref, w1_ref, b1_ref, w2_ref, b2_ref, o_ref):
    """Single-pass fused SE gate + residual add for one batch element.

    x_ref / r_ref / o_ref: (1, C, S)  — C on sublanes, S = D*H*W on lanes.
    w1_ref: (hid, C) f32   b1_ref: (hid, 1) f32
    w2_ref: (C, hid) f32   b2_ref: (C, 1) f32   (pre-cast in the wrapper)
    """
    x = x_ref[0]                                                    # (C, S)
    S = x.shape[1]
    # Global average pool on the MXU (keeps the serial chain off the XLU);
    # f32 accumulation, no f32 copy of the (C, S) slab.
    ones = jnp.ones((S, 1), dtype=x.dtype)
    pooled = jnp.dot(x, ones, preferred_element_type=jnp.float32) * (1.0 / S)

    # Column-oriented fc1 -> LeakyReLU(0.01) -> fc2: no transposes; the gate
    # stays a (C, 1) column that broadcasts natively over the lane axis.
    h = jnp.dot(w1_ref[...], pooled,
                preferred_element_type=jnp.float32) + b1_ref[...]   # (hid, 1)
    h = jnp.where(h > 0.0, h, 0.01 * h)
    g = jnp.dot(w2_ref[...], h,
                preferred_element_type=jnp.float32) + b2_ref[...]   # (C, 1)
    # sigmoid via exp + approximate reciprocal (EUP slots).
    g = pl.reciprocal(1.0 + jnp.exp(-g), approx=True)

    # Rescale in the input dtype and fuse the residual add.
    o_ref[0] = (x * g.astype(x.dtype) + r_ref[0]).astype(o_ref.dtype)


def _make_pool_kernel(S, tS):
    """Two-pass path, pass 1: per-channel sums accumulated over S tiles.

    Uses a cdiv grid; the tail tile is masked (jnp.where, NaN-safe) when tS
    does not divide S. Reduction runs on the MXU via a ones column.
    """
    needs_mask = (S % tS) != 0

    def kernel(x_ref, sum_ref):
        @pl.when(pl.program_id(1) == 0)
        def _init():
            sum_ref[...] = jnp.zeros_like(sum_ref)

        x = x_ref[0]                                                # (C, tS)
        if needs_mask:
            rem = S - pl.program_id(1) * tS          # valid lanes in this tile
            lane = jax.lax.broadcasted_iota(jnp.int32, (1, tS), 1)
            x = jnp.where(lane < rem, x, jnp.zeros((), x.dtype))
        ones = jnp.ones((tS, 1), dtype=x.dtype)
        sum_ref[0] += jnp.dot(x, ones, preferred_element_type=jnp.float32)

    return kernel


def _make_scale_kernel(S):
    """Two-pass path, pass 2: gate FC/sigmoid (folded in) + rescale + residual.

    The gate is recomputed per tile from the (C,1) sums — two tiny dots plus
    an exp — which is negligible next to the streamed (C, tS) slabs and keeps
    both grid axes 'parallel' (no plain-JAX interlude, S axis core-splittable).
    """
    inv_s = 1.0 / float(S)

    def kernel(sum_ref, w1_ref, b1_ref, w2_ref, b2_ref, x_ref, r_ref, o_ref):
        pooled = sum_ref[0] * inv_s                                 # (C, 1) f32
        h = jnp.dot(w1_ref[...], pooled,
                    preferred_element_type=jnp.float32) + b1_ref[...]
        h = jnp.where(h > 0.0, h, 0.01 * h)
        g = jnp.dot(w2_ref[...], h,
                    preferred_element_type=jnp.float32) + b2_ref[...]
        g = pl.reciprocal(1.0 + jnp.exp(-g), approx=True)

        x = x_ref[0]
        o_ref[0] = (x * g.astype(x.dtype) + r_ref[0]).astype(o_ref.dtype)

    return kernel


# ---------------------------------------------------------------------------
# Pallas wrapper: fused SE + residual
# ---------------------------------------------------------------------------

def _pick_spatial_tile(S, C, itemsize, *, n_streams, buffers, budget,
                       max_tile=None):
    """Largest multiple-of-128 lane tile whose streamed buffers fit `budget`.

    Returns (tile, num_tiles) for a cdiv grid; the tile need not divide S
    (boundary blocks are masked in the kernels / dropped on writeback).
    """
    S_pad = _round_up(S, 128)
    cap = S_pad
    if max_tile is not None:
        cap = min(S_pad, max(128, (int(max_tile) // 128) * 128))
    per_lane = n_streams * buffers * C * itemsize      # bytes per tile lane
    t = (budget // (per_lane * 128)) * 128
    t = int(min(max(t, 128), cap))
    n_tiles = -(-S // t)
    # Re-balance so tiles are as even as possible without adding grid steps
    # (less padded/wasted lane work on the tail tile).
    t = max(128, min(t, _round_up(-(-S // n_tiles), 128)))
    return t, n_tiles


def se_scale_add(x, residual, w1, b1, w2, b2, *, force_two_pass=False,
                 max_spatial_tile=None):
    """sigmoid(fc2(lrelu(fc1(global_avg_pool(x))))) * x + residual.

    x, residual: (N, C, D, H, W).  Weights follow nn.Linear layout:
    w1 (hid, C), b1 (hid,), w2 (C, hid), b2 (C,).
    """
    N, C, D, H, W = x.shape
    S = D * H * W
    hid = w1.shape[0]
    assert residual.shape == x.shape and residual.dtype == x.dtype

    x_flat = x.reshape(N, C, S)
    r_flat = residual.reshape(N, C, S)
    itemsize = jnp.dtype(x.dtype).itemsize

    # Hoisted f32 casts / column-shaped biases (done once, outside kernels).
    w1f = w1.astype(jnp.float32)
    w2f = w2.astype(jnp.float32)
    b1c = b1.reshape(hid, 1).astype(jnp.float32)
    b2c = b2.reshape(C, 1).astype(jnp.float32)

    cap = _vmem_capacity_bytes()
    vmem_ceiling = max(cap - (8 << 20), 32 << 20)   # leave Mosaic headroom
    single_budget = int(0.70 * cap)                 # fused-path slab budget
    tile_budget = int(0.60 * cap)                   # per-pass streaming budget

    slab = C * S * itemsize                         # one (C, S) slab, 1 buffer
    pipeline_mode = None
    single_pass = False
    if not force_two_pass:
        if 6 * slab <= single_budget:               # x, r, out double-buffered
            single_pass = True
        elif 3 * slab <= single_budget:             # keep 3 HBM passes with
            single_pass = True                      # reduced pipelining depth
            pipeline_mode = pl.Buffered(1)

    if single_pass:
        bufs = 1 if pipeline_mode is not None else 2
        need = 3 * bufs * slab + (4 << 20)
        vmem_limit = int(min(max(need, 32 << 20), vmem_ceiling))

        def big_spec():
            if pipeline_mode is None:
                return pl.BlockSpec((1, C, S), lambda n: (n, 0, 0))
            return pl.BlockSpec((1, C, S), lambda n: (n, 0, 0),
                                pipeline_mode=pipeline_mode)

        out_flat = pl.pallas_call(
            _se_fused_kernel,
            out_shape=jax.ShapeDtypeStruct((N, C, S), x.dtype),
            grid_spec=pltpu.PrefetchScalarGridSpec(
                num_scalar_prefetch=0,
                grid=(N,),
                in_specs=[
                    big_spec(),
                    big_spec(),
                    pl.BlockSpec((hid, C), lambda n: (0, 0)),
                    pl.BlockSpec((hid, 1), lambda n: (0, 0)),
                    pl.BlockSpec((C, hid), lambda n: (0, 0)),
                    pl.BlockSpec((C, 1), lambda n: (0, 0)),
                ],
                out_specs=big_spec(),
            ),
            compiler_params=pltpu.CompilerParams(
                dimension_semantics=("parallel",),
                vmem_limit_bytes=vmem_limit),
        )(x_flat, r_flat, w1f, b1c, w2f, b2c)
        return out_flat.reshape(N, C, D, H, W)

    # ---- Two-pass, S-tiled path (bounded VMEM for very large C*S slabs) ----
    # Pass 1 streams only x -> much larger tiles than pass 2 (x, r, out).
    t1, n1 = _pick_spatial_tile(S, C, itemsize, n_streams=1, buffers=2,
                                budget=tile_budget, max_tile=max_spatial_tile)
    t2, n2 = _pick_spatial_tile(S, C, itemsize, n_streams=3, buffers=2,
                                budget=tile_budget, max_tile=max_spatial_tile)
    lim1 = int(min(max(2 * C * t1 * itemsize + (4 << 20), 32 << 20),
                   vmem_ceiling))
    lim2 = int(min(max(6 * C * t2 * itemsize + (4 << 20), 32 << 20),
                   vmem_ceiling))

    # Pass 1: per-channel sums over S tiles (f32 accumulation in the output).
    sums = pl.pallas_call(
        _make_pool_kernel(S, t1),
        out_shape=jax.ShapeDtypeStruct((N, C, 1), jnp.float32),
        grid_spec=pltpu.PrefetchScalarGridSpec(
            num_scalar_prefetch=0,
            grid=(N, n1),
            in_specs=[pl.BlockSpec((1, C, t1), lambda n, s: (n, 0, s))],
            out_specs=pl.BlockSpec((1, C, 1), lambda n, s: (n, 0, 0)),
        ),
        compiler_params=pltpu.CompilerParams(
            dimension_semantics=("parallel", "arbitrary"),
            vmem_limit_bytes=lim1),
    )(x_flat)

    # Pass 2: gate (from sums) + rescale + residual add, fully parallel over
    # (N, S tiles) — no plain-JAX gate interlude between the two passes.
    out_flat = pl.pallas_call(
        _make_scale_kernel(S),
        out_shape=jax.ShapeDtypeStruct((N, C, S), x.dtype),
        grid_spec=pltpu.PrefetchScalarGridSpec(
            num_scalar_prefetch=0,
            grid=(N, n2),
            in_specs=[
                pl.BlockSpec((1, C, 1), lambda n, s: (n, 0, 0)),
                pl.BlockSpec((hid, C), lambda n, s: (0, 0)),
                pl.BlockSpec((hid, 1), lambda n, s: (0, 0)),
                pl.BlockSpec((C, hid), lambda n, s: (0, 0)),
                pl.BlockSpec((C, 1), lambda n, s: (0, 0)),
                pl.BlockSpec((1, C, t2), lambda n, s: (n, 0, s)),
                pl.BlockSpec((1, C, t2), lambda n, s: (n, 0, s)),
            ],
            out_specs=pl.BlockSpec((1, C, t2), lambda n, s: (n, 0, s)),
        ),
        compiler_params=pltpu.CompilerParams(
            dimension_semantics=("parallel", "parallel"),
            vmem_limit_bytes=lim2),
    )(sums, w1f, b1c, w2f, b2c, x_flat, r_flat)
    return out_flat.reshape(N, C, D, H, W)


# ---------------------------------------------------------------------------
# Remaining BottleNeckResblock layers (native XLA ops) + pure-JAX reference
# ---------------------------------------------------------------------------

def _conv3d(x, w, *, stride=(1, 1, 1), padding="VALID"):
    # TODO(synk): nn.Conv3d is left to XLA's native convolution — a Pallas
    # rewrite of dense 3-D conv has no clean win over the TPU conv emitter.
    return jax.lax.conv_general_dilated(
        x, w, window_strides=stride, padding=padding,
        dimension_numbers=("NCDHW", "OIDHW", "NCDHW"))


def _inplace_abn(x, scale, bias, mean, var, eps=1e-5, slope=0.01):
    # TODO(synk): InPlaceABNSync is not defined in the spec; modeled as
    # inference-mode BatchNorm3d + LeakyReLU(0.01) (the inplace_abn default).
    shp = (1, -1, 1, 1, 1)
    y = (x - mean.reshape(shp)) * (scale * jax.lax.rsqrt(var + eps)).reshape(shp) \
        + bias.reshape(shp)
    return jnp.where(y > 0.0, y, slope * y)


def _se_reference(x, w1, b1, w2, b2):
    """Pure-JAX SEComponent forward (mirrors the PyTorch module)."""
    n, c = x.shape[0], x.shape[1]
    pooled = jnp.mean(x.astype(jnp.float32), axis=(2, 3, 4))   # AvgPool3d(full)
    h = pooled @ w1.T + b1
    h = jnp.where(h > 0.0, h, 0.01 * h)                        # LeakyReLU(0.01)
    g = jax.nn.sigmoid(h @ w2.T + b2)
    return (g.reshape(n, c, 1, 1, 1) * x.astype(jnp.float32)).astype(x.dtype)


def bottleneck_resblock_forward(x, p, *, use_pallas_se=True, force_two_pass=False,
                                max_spatial_tile=None):
    """Forward pass of BottleNeckResblock (stride=1, downsample=None)."""
    residual = x
    out = _inplace_abn(x, **p["bn1"])
    out = _conv3d(out, p["conv1"])
    out = _inplace_abn(out, **p["bn2"])
    out = _conv3d(out, p["conv2"], padding=((1, 1), (1, 1), (1, 1)))
    out = _inplace_abn(out, **p["bn3"])
    out = _conv3d(out, p["conv3"])
    # TODO(synk): downsample / stride != 1 variants are not implemented (the
    # spec's default ctor args use stride=1 and downsample=None).
    if use_pallas_se:
        return se_scale_add(out, residual, p["w1"], p["b1"], p["w2"], p["b2"],
                            force_two_pass=force_two_pass,
                            max_spatial_tile=max_spatial_tile)
    return _se_reference(out, p["w1"], p["b1"], p["w2"], p["b2"]) + residual


# ---------------------------------------------------------------------------
# Demo / self-check
# ---------------------------------------------------------------------------

if __name__ == "__main__":
    # Shapes consistent with BottleNeckResblock(inplanes=32, planes=16,
    # expansion=2, stride=1, downsample=None), se_resize_factor=8, and
    # senet_global_average[index] == full spatial extent.
    N, inplanes, planes, expansion = 2, 32, 16, 2
    C_se = planes * expansion            # 32 (== inplanes so residual add is valid)
    hid = round(C_se / 8)                # se_resize_factor = 8 -> hid = 4

    key = jax.random.PRNGKey(0)
    ks = jax.random.split(key, 20)

    def bn_par(i, c):
        return dict(
            scale=1.0 + 0.1 * jax.random.normal(ks[i], (c,), jnp.float32),
            bias=0.1 * jax.random.normal(ks[i + 1], (c,), jnp.float32),
            mean=0.1 * jax.random.normal(ks[i + 2], (c,), jnp.float32),
            var=jax.random.uniform(ks[i + 3], (c,), jnp.float32, 0.5, 1.5),
        )

    params = dict(
        bn1=bn_par(0, inplanes),
        conv1=0.1 * jax.random.normal(ks[4], (planes, inplanes, 1, 1, 1), jnp.float32),
        bn2=bn_par(5, planes),
        conv2=0.05 * jax.random.normal(ks[9], (planes, planes, 3, 3, 3), jnp.float32),
        bn3=bn_par(10, planes),
        conv3=0.1 * jax.random.normal(ks[14], (C_se, planes, 1, 1, 1), jnp.float32),
        w1=0.1 * jax.random.normal(ks[15], (hid, C_se), jnp.float32),
        b1=0.1 * jax.random.normal(ks[16], (hid,), jnp.float32),
        w2=0.1 * jax.random.normal(ks[17], (C_se, hid), jnp.float32),
        b2=0.1 * jax.random.normal(ks[18], (C_se,), jnp.float32),
    )

    def check(spatial, max_tile_for_two_pass):
        D = H = W = spatial
        kx = jax.random.fold_in(ks[19], spatial)
        x = jax.random.normal(kx, (N, inplanes, D, H, W), jnp.float32)
        ref = bottleneck_resblock_forward(x, params, use_pallas_se=False)

        # Single-pass fused SE + residual kernel.
        out = jax.block_until_ready(
            bottleneck_resblock_forward(x, params, use_pallas_se=True))
        assert out.shape == ref.shape and out.dtype == ref.dtype
        assert jnp.allclose(out, ref, rtol=2e-3, atol=2e-3), \
            f"single-pass mismatch (S={D*H*W})"

        # S-tiled two-pass path (forced, small tiles) — exercises the cdiv
        # reduce -> fused gate -> rescale structure used for large C*S slabs.
        out2 = jax.block_until_ready(
            bottleneck_resblock_forward(x, params, use_pallas_se=True,
                                        force_two_pass=True,
                                        max_spatial_tile=max_tile_for_two_pass))
        assert jnp.allclose(out2, ref, rtol=2e-3, atol=2e-3), \
            f"two-pass mismatch (S={D*H*W})"

    # S = 512: lane-dense, evenly tiled two-pass (4 x 128-lane tiles).
    check(8, 128)
    # S = 216: S % 128 != 0 -> full-extent single-pass block, and a cdiv-tiled
    # two-pass with a masked tail tile (the non-divisor path).
    check(6, 128)

    print("KERNEL_OK")
</pallas_src>

<mosaic_0001>
module attributes {stable_mosaic.version = 11 : i64} {
  func.func @_se_fused_kernel(%arg0: i32, %arg1: memref<1x32x512xf32, #tpu.memory_space<vmem>>, %arg2: memref<1x32x512xf32, #tpu.memory_space<vmem>>, %arg3: memref<4x32xf32, #tpu.memory_space<vmem>>, %arg4: memref<4x1xf32, #tpu.memory_space<vmem>>, %arg5: memref<32x4xf32, #tpu.memory_space<vmem>>, %arg6: memref<32x1xf32, #tpu.memory_space<vmem>>, %arg7: memref<1x32x512xf32, #tpu.memory_space<vmem>>) attributes {dimension_semantics = [#tpu.dimension_semantics<parallel>], iteration_bounds = array<i64: 2>, scalar_prefetch = 0 : i64, scratch_operands = 0 : i64, tpu.core_type = #tpu.core_type<tc>, window_params = [{transform_indices = @transform_0, window_bounds = array<i64: 1, 32, 512>}, {transform_indices = @transform_1, window_bounds = array<i64: 1, 32, 512>}, {pipeline_mode = #tpu.pipeline_mode<synchronous>, transform_indices = @transform_2, window_bounds = array<i64: 4, 32>}, {pipeline_mode = #tpu.pipeline_mode<synchronous>, transform_indices = @transform_3, window_bounds = array<i64: 4, 1>}, {pipeline_mode = #tpu.pipeline_mode<synchronous>, transform_indices = @transform_4, window_bounds = array<i64: 32, 4>}, {pipeline_mode = #tpu.pipeline_mode<synchronous>, transform_indices = @transform_5, window_bounds = array<i64: 32, 1>}, {transform_indices = @transform_6, window_bounds = array<i64: 1, 32, 512>}]} {
    %c0 = arith.constant 0 : index
    %c0_0 = arith.constant 0 : index
    %c0_1 = arith.constant 0 : index
    %0 = vector.load %arg1[%c0, %c0_0, %c0_1] : memref<1x32x512xf32, #tpu.memory_space<vmem>>, vector<1x32x512xf32>
    %1 = vector.shape_cast %0 : vector<1x32x512xf32> to vector<32x512xf32>
    %cst = arith.constant 1.000000e+00 : f32
    %2 = vector.broadcast %cst : f32 to vector<512x1xf32>
    %cst_2 = arith.constant dense<0.000000e+00> : vector<32x1xf32>
    %3 = tpu.matmul %1, %2, %cst_2 {dimension_numbers = #tpu.dot_dimension_numbers<[1], [0], [0], [1], [0, 0, 1, 1], [], []>} : vector<32x512xf32>, vector<512x1xf32>, vector<32x1xf32> -> vector<32x1xf32>
    %cst_3 = arith.constant 0.001953125 : f32
    %4 = vector.broadcast %cst_3 : f32 to vector<32x1xf32>
    %5 = arith.mulf %3, %4 : vector<32x1xf32>
    %c0_4 = arith.constant 0 : index
    %c0_5 = arith.constant 0 : index
    %6 = vector.load %arg3[%c0_4, %c0_5] : memref<4x32xf32, #tpu.memory_space<vmem>>, vector<4x32xf32>
    %cst_6 = arith.constant dense<0.000000e+00> : vector<4x1xf32>
    %7 = tpu.matmul %6, %5, %cst_6 {dimension_numbers = #tpu.dot_dimension_numbers<[1], [0], [0], [1], [0, 0, 1, 1], [], []>} : vector<4x32xf32>, vector<32x1xf32>, vector<4x1xf32> -> vector<4x1xf32>
    %c0_7 = arith.constant 0 : index
    %c0_8 = arith.constant 0 : index
    %8 = vector.load %arg4[%c0_7, %c0_8] : memref<4x1xf32, #tpu.memory_space<vmem>>, vector<4x1xf32>
    %9 = arith.addf %7, %8 : vector<4x1xf32>
    %cst_9 = arith.constant 0.000000e+00 : f32
    %10 = vector.broadcast %cst_9 : f32 to vector<4x1xf32>
    %11 = arith.cmpf ogt, %9, %10 : vector<4x1xf32>
    %cst_10 = arith.constant 0.00999999977 : f32
    %12 = vector.broadcast %cst_10 : f32 to vector<4x1xf32>
    %13 = arith.mulf %12, %9 : vector<4x1xf32>
    %14 = arith.select %11, %9, %13 : vector<4x1xi1>, vector<4x1xf32>
    %c0_11 = arith.constant 0 : index
    %c0_12 = arith.constant 0 : index
    %15 = vector.load %arg5[%c0_11, %c0_12] : memref<32x4xf32, #tpu.memory_space<vmem>>, vector<32x4xf32>
    %cst_13 = arith.constant dense<0.000000e+00> : vector<32x1xf32>
    %16 = tpu.matmul %15, %14, %cst_13 {dimension_numbers = #tpu.dot_dimension_numbers<[1], [0], [0], [1], [0, 0, 1, 1], [], []>} : vector<32x4xf32>, vector<4x1xf32>, vector<32x1xf32> -> vector<32x1xf32>
    %c0_14 = arith.constant 0 : index
    %c0_15 = arith.constant 0 : index
    %17 = vector.load %arg6[%c0_14, %c0_15] : memref<32x1xf32, #tpu.memory_space<vmem>>, vector<32x1xf32>
    %18 = arith.addf %16, %17 : vector<32x1xf32>
    %cst_16 = arith.constant 0.000000e+00 : f32
    %19 = vector.broadcast %cst_16 : f32 to vector<32x1xf32>
    %20 = arith.subf %19, %18 : vector<32x1xf32>
    %21 = math.exp %20 : vector<32x1xf32>
    %cst_17 = arith.constant 1.000000e+00 : f32
    %22 = vector.broadcast %cst_17 : f32 to vector<32x1xf32>
    %23 = arith.addf %22, %21 : vector<32x1xf32>
    %24 = tpu.reciprocal %23 {approx = true} : vector<32x1xf32> -> vector<32x1xf32>
    %25 = vector.broadcast %24 : vector<32x1xf32> to vector<32x512xf32>
    %26 = arith.mulf %1, %25 : vector<32x512xf32>
    %c0_18 = arith.constant 0 : index
    %c0_19 = arith.constant 0 : index
    %c0_20 = arith.constant 0 : index
    %27 = vector.load %arg2[%c0_18, %c0_19, %c0_20] : memref<1x32x512xf32, #tpu.memory_space<vmem>>, vector<1x32x512xf32>
    %28 = vector.shape_cast %27 : vector<1x32x512xf32> to vector<32x512xf32>
    %29 = arith.addf %26, %28 : vector<32x512xf32>
    %c0_21 = arith.constant 0 : index
    %c0_22 = arith.constant 0 : index
    %c0_23 = arith.constant 0 : index
    %30 = vector.load %arg7[%c0_21, %c0_22, %c0_23] : memref<1x32x512xf32, #tpu.memory_space<vmem>>, vector<1x32x512xf32>
    %31 = vector.shape_cast %30 : vector<1x32x512xf32> to vector<32x512xf32>
    %32 = vector.shape_cast %29 : vector<32x512xf32> to vector<1x32x512xf32>
    tpu.vector_store %arg7[%c0_21, %c0_22, %c0_23], %32 {strides = array<i32>} : memref<1x32x512xf32, #tpu.memory_space<vmem>>, vector<1x32x512xf32>,
    return
  }
  func.func @transform_0(%arg0: i32) -> (i32, i32, i32) {
    %c0_i32 = arith.constant 0 : i32
    %c0_i32_0 = arith.constant 0 : i32
    %c0_i32_1 = arith.constant 0 : i32
    return %arg0, %c0_i32, %c0_i32_0 : i32, i32, i32
  }
  func.func @transform_1(%arg0: i32) -> (i32, i32, i32) {
    %c0_i32 = arith.constant 0 : i32
    %c0_i32_0 = arith.constant 0 : i32
    %c0_i32_1 = arith.constant 0 : i32
    return %arg0, %c0_i32, %c0_i32_0 : i32, i32, i32
  }
  func.func @transform_2(%arg0: i32) -> (i32, i32) {
    %c0_i32 = arith.constant 0 : i32
    %c0_i32_0 = arith.constant 0 : i32
    %c0_i32_1 = arith.constant 0 : i32
    return %c0_i32, %c0_i32_0 : i32, i32
  }
  func.func @transform_3(%arg0: i32) -> (i32, i32) {
    %c0_i32 = arith.constant 0 : i32
    %c0_i32_0 = arith.constant 0 : i32
    %c0_i32_1 = arith.constant 0 : i32
    return %c0_i32, %c0_i32_0 : i32, i32
  }
  func.func @transform_4(%arg0: i32) -> (i32, i32) {
    %c0_i32 = arith.constant 0 : i32
    %c0_i32_0 = arith.constant 0 : i32
    %c0_i32_1 = arith.constant 0 : i32
    return %c0_i32, %c0_i32_0 : i32, i32
  }
  func.func @transform_5(%arg0: i32) -> (i32, i32) {
    %c0_i32 = arith.constant 0 : i32
    %c0_i32_0 = arith.constant 0 : i32
    %c0_i32_1 = arith.constant 0 : i32
    return %c0_i32, %c0_i32_0 : i32, i32
  }
  func.func @transform_6(%arg0: i32) -> (i32, i32, i32) {
    %c0_i32 = arith.constant 0 : i32
    %c0_i32_0 = arith.constant 0 : i32
    %c0_i32_1 = arith.constant 0 : i32
    return %arg0, %c0_i32, %c0_i32_0 : i32, i32, i32
  }
}

</mosaic_0001>

<llo_original>
// kernel: tpu_custom_call.1
$region0: #{tpu_custom_call.1}
  #allocation0 [shape = 'u32[]', space=smem, size = 0x4, offset = 0x4, fixed_abs, tag = 'smem constant byte address 0x4 - core index']
  #allocation1 [shape = 'u32[144,128]{1,0:T(1,128)}', space=vmem, size = 0x12000, scoped, tag = 'internal scratch']
  %s0 = inlined_call_operand.hbm [shape: f32[2,32,512], index: 0, kind: input, shape index: {}]
  %s1 = inlined_call_operand.hbm [shape: f32[2,32,512], index: 1, kind: input, shape index: {}]
  %s2 = inlined_call_operand.vmem [shape: f32[4,32], index: 2, kind: input, shape index: {}]
  %s3 = inlined_call_operand.vmem [shape: f32[4,1], index: 3, kind: input, shape index: {}]
  %s4 = inlined_call_operand.vmem [shape: f32[32,4], index: 4, kind: input, shape index: {}]
  %s5 = inlined_call_operand.vmem [shape: f32[32,1], index: 5, kind: input, shape index: {}]
  %s6 = inlined_call_operand.hbm [shape: f32[2,32,512], index: 6, kind: output, shape index: {}]
  %s7 = sld [smem:[#allocation0]]
  $region65: #{tpu_custom_call.1} parent=0
    _
  %s9 = ssub.s32 1, %s7
  %s10 = scalar_select 0, %s9, %s7
  $region1: #{tpu_custom_call.1} parent=0
    #allocation2 [shape = 'u8[131072]{0}', space=vmem, size = 0x20000, scoped, tag = 'input window, operand 0']
    #allocation3 [shape = 's32[2]{0}', space=sflag, size = 0x8, scoped, tag = 'scoped memory for tpu_custom_call.1']
    #allocation4 [shape = 's32[2]{0}', space=sflag, size = 0x8, scoped, tag = 'scoped memory for tpu_custom_call.1']
    #allocation5 [shape = 'u8[131072]{0}', space=vmem, size = 0x20000, scoped, tag = 'input window, operand 1']
    #allocation6 [shape = 's32[2]{0}', space=sflag, size = 0x8, scoped, tag = 'scoped memory for tpu_custom_call.1']
    #allocation7 [shape = 'u8[131072]{0}', space=vmem, size = 0x20000, scoped, tag = 'output window, operand 0']
    %11 = vsyncpa [#allocation3], 0
    %s12 = scalar_lea.sflag [#allocation3], 1
    %13 = vsyncpa %s12, 0
    %14 = vsyncpa [#allocation6], 0
    %s15 = scalar_lea.sflag [#allocation6], 1
    %16 = vsyncpa %s15, 0
    %17 = vsyncpa [#allocation4], 0
    %s18 = scalar_lea.sflag [#allocation4], 1
    %19 = vsyncpa %s18, 0
    loop: start=0, step=1, limit=4
    $region2: #{tpu_custom_call.1} parent=1 // loop_pre_header
      _
    $region3: #{tpu_custom_call.1} parent=1 // loop_header
      %s21 = sphi 0, %s25
      %p22 = scmp.ge.s32.totalorder %s21, 4
      %s31 = sphi 0, %s33
      %s34 = sphi 0, %s31
      %s35 = sphi 0, %s34
      %s51 = sphi 0, %s35
      %s57 = sphi 0, %s59
      %s60 = sphi 0, %s57
      %s61 = sphi 0, %s60
      %s77 = sphi 0, %s61
      %s81 = sphi 0, %s81
      %s83 = sphi 0, %s81
      %s84 = sphi 0, %s83
      %s98 = sphi 0, %s84
      %s102 = sphi 0, %s102
      %s104 = sphi 0, %s102
      %s105 = sphi 0, %s104
      %s119 = sphi 0, %s105
      %s123 = sphi 0, %s123
      %s125 = sphi 0, %s123
      %s126 = sphi 0, %s125
      %s140 = sphi 0, %s126
      %s144 = sphi 0, %s144
      %s146 = sphi 0, %s144
      %s147 = sphi 0, %s146
      %s161 = sphi 0, %s147
      %s167 = sphi 0, %s169
      %s170 = sphi 0, %s167
      %s171 = sphi 0, %s170
      %s187 = sphi 0, %s171
    $region4: #{tpu_custom_call.1} parent=1 // loop_header_branch
      %24 = sbr.rel (%p22) target = $region8
    $region5: #{tpu_custom_call.1} parent=1 // loop_body
      %s26 = ssub.s32 %s21, 1
      %s27 = ssub.s32 %s21, 2
      %s28 = sadd.s32 %s21, 1
      %s29 = ssub.s32 %s21, %s28
      %p30 = scmp.eq.s32.totalorder %s29, 0
      %s32 = sadd.s32 %s31, 1
      %s33 = scalar_select %p30, %s31, %s32
      %p36 = pneg %p30
      %p37 = scmp.eq.s32.totalorder %s21, 1
      %p38 = por %p36, %p37
      %p39 = scmp.ne.s32.totalorder %s31, %s34
      %p40 = scmp.eq.s32.totalorder %s21, 0
      %p41 = por %p39, %p40
      %p42 = scmp.ne.s32.totalorder %s31, %s34
      %p43 = scmp.eq.s32.totalorder %s26, 1
      %p44 = por %p42, %p43
      %p45 = scmp.ne.s32.totalorder %s34, %s35
      %p46 = scmp.eq.s32.totalorder %s26, 0
      %p47 = por %p45, %p46
      %p48 = scmp.ne.s32.totalorder %s34, %s35
      %p49 = scmp.eq.s32.totalorder %s27, 1
      %p50 = por %p48, %p49
      %p52 = scmp.ne.s32.totalorder %s35, %s51
      %p53 = scmp.eq.s32.totalorder %s27, 0
      %p54 = por %p52, %p53
      %s55 = ssub.s32 %s21, %s28
      %p56 = scmp.eq.s32.totalorder %s55, 0
      %s58 = sadd.s32 %s57, 1
      %s59 = scalar_select %p56, %s57, %s58
      %p62 = pneg %p56
      %p63 = scmp.eq.s32.totalorder %s21, 1
      %p64 = por %p62, %p63
      %p65 = scmp.ne.s32.totalorder %s57, %s60
      %p66 = scmp.eq.s32.totalorder %s21, 0
      %p67 = por %p65, %p66
      %p68 = scmp.ne.s32.totalorder %s57, %s60
      %p69 = scmp.eq.s32.totalorder %s26, 1
      %p70 = por %p68, %p69
      %p71 = scmp.ne.s32.totalorder %s60, %s61
      %p72 = scmp.eq.s32.totalorder %s26, 0
      %p73 = por %p71, %p72
      %p74 = scmp.ne.s32.totalorder %s60, %s61
      %p75 = scmp.eq.s32.totalorder %s27, 1
      %p76 = por %p74, %p75
      %p78 = scmp.ne.s32.totalorder %s61, %s77
      %p79 = scmp.eq.s32.totalorder %s27, 0
      %p80 = por %p78, %p79
      %s82 = sadd.s32 %s81, 1
      %p85 = scmp.eq.s32.totalorder %s21, 1
      %p86 = scmp.ne.s32.totalorder %s81, %s83
      %p87 = scmp.eq.s32.totalorder %s21, 0
      %p88 = por %p86, %p87
      %p89 = scmp.ne.s32.totalorder %s81, %s83
      %p90 = scmp.eq.s32.totalorder %s26, 1
      %p91 = por %p89, %p90
      %p92 = scmp.ne.s32.totalorder %s83, %s84
      %p93 = scmp.eq.s32.totalorder %s26, 0
      %p94 = por %p92, %p93
      %p95 = scmp.ne.s32.totalorder %s83, %s84
      %p96 = scmp.eq.s32.totalorder %s27, 1
      %p97 = por %p95, %p96
      %p99 = scmp.ne.s32.totalorder %s84, %s98
      %p100 = scmp.eq.s32.totalorder %s27, 0
      %p101 = por %p99, %p100
      %s103 = sadd.s32 %s102, 1
      %p106 = scmp.eq.s32.totalorder %s21, 1
      %p107 = scmp.ne.s32.totalorder %s102, %s104
      %p108 = scmp.eq.s32.totalorder %s21, 0
      %p109 = por %p107, %p108
      %p110 = scmp.ne.s32.totalorder %s102, %s104
      %p111 = scmp.eq.s32.totalorder %s26, 1
      %p112 = por %p110, %p111
      %p113 = scmp.ne.s32.totalorder %s104, %s105
      %p114 = scmp.eq.s32.totalorder %s26, 0
      %p115 = por %p113, %p114
      %p116 = scmp.ne.s32.totalorder %s104, %s105
      %p117 = scmp.eq.s32.totalorder %s27, 1
      %p118 = por %p116, %p117
      %p120 = scmp.ne.s32.totalorder %s105, %s119
      %p121 = scmp.eq.s32.totalorder %s27, 0
      %p122 = por %p120, %p121
      %s124 = sadd.s32 %s123, 1
      %p127 = scmp.eq.s32.totalorder %s21, 1
      %p128 = scmp.ne.s32.totalorder %s123, %s125
      %p129 = scmp.eq.s32.totalorder %s21, 0
      %p130 = por %p128, %p129
      %p131 = scmp.ne.s32.totalorder %s123, %s125
      %p132 = scmp.eq.s32.totalorder %s26, 1
      %p133 = por %p131, %p132
      %p134 = scmp.ne.s32.totalorder %s125, %s126
      %p135 = scmp.eq.s32.totalorder %s26, 0
      %p136 = por %p134, %p135
      %p137 = scmp.ne.s32.totalorder %s125, %s126
      %p138 = scmp.eq.s32.totalorder %s27, 1
      %p139 = por %p137, %p138
      %p141 = scmp.ne.s32.totalorder %s126, %s140
      %p142 = scmp.eq.s32.totalorder %s27, 0
      %p143 = por %p141, %p142
      %s145 = sadd.s32 %s144, 1
      %p148 = scmp.eq.s32.totalorder %s21, 1
      %p149 = scmp.ne.s32.totalorder %s144, %s146
      %p150 = scmp.eq.s32.totalorder %s21, 0
      %p151 = por %p149, %p150
      %p152 = scmp.ne.s32.totalorder %s144, %s146
      %p153 = scmp.eq.s32.totalorder %s26, 1
      %p154 = por %p152, %p153
      %p155 = scmp.ne.s32.totalorder %s146, %s147
      %p156 = scmp.eq.s32.totalorder %s26, 0
      %p157 = por %p155, %p156
      %p158 = scmp.ne.s32.totalorder %s146, %s147
      %p159 = scmp.eq.s32.totalorder %s27, 1
      %p160 = por %p158, %p159
      %p162 = scmp.ne.s32.totalorder %s147, %s161
      %p163 = scmp.eq.s32.totalorder %s27, 0
      %p164 = por %p162, %p163
      %s165 = ssub.s32 %s21, %s28
      %p166 = scmp.eq.s32.totalorder %s165, 0
      %s168 = sadd.s32 %s167, 1
      %s169 = scalar_select %p166, %s167, %s168
      %p172 = pneg %p166
      %p173 = scmp.eq.s32.totalorder %s21, 1
      %p174 = por %p172, %p173
      %p175 = scmp.ne.s32.totalorder %s167, %s170
      %p176 = scmp.eq.s32.totalorder %s21, 0
      %p177 = por %p175, %p176
      %p178 = scmp.ne.s32.totalorder %s167, %s170
      %p179 = scmp.eq.s32.totalorder %s26, 1
      %p180 = por %p178, %p179
      %p181 = scmp.ne.s32.totalorder %s170, %s171
      %p182 = scmp.eq.s32.totalorder %s26, 0
      %p183 = por %p181, %p182
      %p184 = scmp.ne.s32.totalorder %s170, %s171
      %p185 = scmp.eq.s32.totalorder %s27, 1
      %p186 = por %p184, %p185
      %p188 = scmp.ne.s32.totalorder %s171, %s187
      %p189 = scmp.eq.s32.totalorder %s27, 0
      %p190 = por %p188, %p189
      %p191 = scmp.le.s32.totalorder 1, %s21
      %p192 = scmp.lt.s32.totalorder %s21, 3
      %p193 = pnand %p191, %p192
      %p194 = pneg %p193
      // Predicated region
      $region9: #{tpu_custom_call.1} parent=5 // pred_check
        _
      $region10: #{tpu_custom_call.1} parent=5 // pred_check_branch
        %196 = sbr.rel (%p193) target = $region12
      $region11: #{tpu_custom_call.1} parent=5 // pred_region
        %s197 = ssub.s32 %s21, 1
        // Predicated region
        $region13: #{tpu_custom_call.1} parent=11 // pred_check
          %p198 = pneg %p94
        $region14: #{tpu_custom_call.1} parent=11 // pred_check_branch
          %200 = sbr.rel (%p198) target = $region16
        $region15: #{tpu_custom_call.1} parent=11 // pred_region
          _
        $region16: #{tpu_custom_call.1} parent=11 // pred_fallthru
          _
        // Predicated region
        $region17: #{tpu_custom_call.1} parent=11 // pred_check
          %p201 = pneg %p115
        $region18: #{tpu_custom_call.1} parent=11 // pred_check_branch
          %203 = sbr.rel (%p201) target = $region20
        $region19: #{tpu_custom_call.1} parent=11 // pred_region
          _
        $region20: #{tpu_custom_call.1} parent=11 // pred_fallthru
          _
        // Predicated region
        $region21: #{tpu_custom_call.1} parent=11 // pred_check
          %p204 = pneg %p136
        $region22: #{tpu_custom_call.1} parent=11 // pred_check_branch
          %206 = sbr.rel (%p204) target = $region24
        $region23: #{tpu_custom_call.1} parent=11 // pred_region
          _
        $region24: #{tpu_custom_call.1} parent=11 // pred_fallthru
          _
        // Predicated region
        $region25: #{tpu_custom_call.1} parent=11 // pred_check
          %p207 = pneg %p157
        $region26: #{tpu_custom_call.1} parent=11 // pred_check_branch
          %209 = sbr.rel (%p207) target = $region28
        $region27: #{tpu_custom_call.1} parent=11 // pred_region
          _
        $region28: #{tpu_custom_call.1} parent=11 // pred_fallthru
          _
      $region12: #{tpu_custom_call.1} parent=5 // pred_fallthru
        _
      %p210 = scmp.lt.s32.totalorder %s21, 2
      // Predicated region
      $region29: #{tpu_custom_call.1} parent=5 // pred_check
        %p211 = pneg %p210
      $region30: #{tpu_custom_call.1} parent=5 // pred_check_branch
        %213 = sbr.rel (%p211) target = $region32
      $region31: #{tpu_custom_call.1} parent=5 // pred_region
        // Predicated region
        $region33: #{tpu_custom_call.1} parent=31 // pred_check
          %p214 = pneg %p41
        $region34: #{tpu_custom_call.1} parent=31 // pred_check_branch
          %216 = sbr.rel (%p214) target = $region36
        $region35: #{tpu_custom_call.1} parent=31 // pred_region
          %s217 = sand.u32 %s31, 1
          %s218 = scalar_lea.sflag [#allocation3], %s217
          %s219 = sand.u32 %s31, 1
          %s220 = smul.addr %s219, 128
          %s221 = scalar_lea.vmem [#allocation2], %s220
          %s223 = ssub.s32 2048, 2048
          %224 = vsyncadd %s218, %s223
          %s225 = smul.addr %s21, 16
          %s226 = smul.addr %s225, 128
          %s227 = scalar_lea.hbm %s0, %s226
          %s228 = sshll.u32 %s221, 4
          %s229 = int_to_ptr.vmem [resolvable:$true] %s228
          %234 = dma.hbm_to_vmem [thread:$0]  %s227, 2048, %s229, %s218, 512, 512, 32
        $region36: #{tpu_custom_call.1} parent=31 // pred_fallthru
          _
        // Predicated region
        $region37: #{tpu_custom_call.1} parent=31 // pred_check
          %p235 = pneg %p67
        $region38: #{tpu_custom_call.1} parent=31 // pred_check_branch
          %237 = sbr.rel (%p235) target = $region40
        $region39: #{tpu_custom_call.1} parent=31 // pred_region
          %s238 = sand.u32 %s57, 1
          %s239 = scalar_lea.sflag [#allocation6], %s238
          %s240 = sand.u32 %s57, 1
          %s241 = smul.addr %s240, 128
          %s242 = scalar_lea.vmem [#allocation5], %s241
          %s244 = ssub.s32 2048, 2048
          %245 = vsyncadd %s239, %s244
          %s246 = smul.addr %s21, 16
          %s247 = smul.addr %s246, 128
          %s248 = scalar_lea.hbm %s1, %s247
          %s249 = sshll.u32 %s242, 4
          %s250 = int_to_ptr.vmem [resolvable:$true] %s249
          %255 = dma.hbm_to_vmem [thread:$0]  %s248, 2048, %s250, %s239, 512, 512, 32
        $region40: #{tpu_custom_call.1} parent=31 // pred_fallthru
          _
      $region32: #{tpu_custom_call.1} parent=5 // pred_fallthru
        _
      %p256 = scmp.le.s32.totalorder 1, %s21
      %p257 = scmp.lt.s32.totalorder %s21, 3
      %p258 = pnand %p256, %p257
      %p259 = pneg %p258
      // Predicated region
      $region41: #{tpu_custom_call.1} parent=5 // pred_check
        _
      $region42: #{tpu_custom_call.1} parent=5 // pred_check_branch
        %261 = sbr.rel (%p258) target = $region44
      $region43: #{tpu_custom_call.1} parent=5 // pred_region
        %s262 = ssub.s32 %s21, 1
        %s263 = sand.u32 %s34, 1
        %s264 = scalar_lea.sflag [#allocation3], %s263
        %s265 = sand.u32 %s34, 1
        %s266 = smul.addr %s265, 128
        %s267 = scalar_lea.vmem [#allocation2], %s266
        // Predicated region
        $region45: #{tpu_custom_call.1} parent=43 // pred_check
          %p268 = pneg %p47
        $region46: #{tpu_custom_call.1} parent=43 // pred_check_branch
          %270 = sbr.rel (%p268) target = $region48
        $region47: #{tpu_custom_call.1} parent=43 // pred_region
          %271 = dma.done %s264, 2048
        $region48: #{tpu_custom_call.1} parent=43 // pred_fallthru
          _
        %s272 = sand.u32 %s60, 1
        %s273 = scalar_lea.sflag [#allocation6], %s272
        %s274 = sand.u32 %s60, 1
        %s275 = smul.addr %s274, 128
        %s276 = scalar_lea.vmem [#allocation5], %s275
        // Predicated region
        $region49: #{tpu_custom_call.1} parent=43 // pred_check
          %p277 = pneg %p73
        $region50: #{tpu_custom_call.1} parent=43 // pred_check_branch
          %279 = sbr.rel (%p277) target = $region52
        $region51: #{tpu_custom_call.1} parent=43 // pred_region
          %280 = dma.done %s273, 2048
        $region52: #{tpu_custom_call.1} parent=43 // pred_fallthru
          _
        %s281 = sand.u32 %s34, 1
        %s282 = scalar_lea.sflag [#allocation3], %s281
        %s283 = sand.u32 %s34, 1
        %s284 = smul.addr %s283, 128
        %s285 = scalar_lea.vmem [#allocation2], %s284
        %p286 = pneg %p47
        %p287 = pneg %p44
        %s288 = sand.u32 %s60, 1
        %s289 = scalar_lea.sflag [#allocation6], %s288
        %s290 = sand.u32 %s60, 1
        %s291 = smul.addr %s290, 128
        %s292 = scalar_lea.vmem [#allocation5], %s291
        %p293 = pneg %p73
        %p294 = pneg %p70
        %p295 = pneg %p94
        %p296 = pneg %p91
        %p297 = pneg %p115
        %p298 = pneg %p112
        %p299 = pneg %p136
        %p300 = pneg %p133
        %p301 = pneg %p157
        %p302 = pneg %p154
        %p303 = pneg %p183
        %p304 = pneg %p180
        %s305 = sand.u32 %s170, 1
        %s306 = scalar_lea.sflag [#allocation4], %s305
        %s307 = sand.u32 %s170, 1
        %s308 = smul.addr %s307, 128
        %s309 = scalar_lea.vmem [#allocation7], %s308
        %v310 = vld [vmem:[%s267] sm:$0xff]
        %v311 = vld [vmem:[%s267 + $0x8] sm:$0xff]
        %v312 = vld [vmem:[%s267 + $0x10] sm:$0xff]
        %v313 = vld [vmem:[%s267 + $0x18] sm:$0xff]
        %v314 = vld [vmem:[%s267 + $0x20] sm:$0xff]
        %v315 = vld [vmem:[%s267 + $0x28] sm:$0xff]
        %v316 = vld [vmem:[%s267 + $0x30] sm:$0xff]
        %v317 = vld [vmem:[%s267 + $0x38] sm:$0xff]
        %v318 = vld [vmem:[%s267 + $0x40] sm:$0xff]
        %v319 = vld [vmem:[%s267 + $0x48] sm:$0xff]
        %v320 = vld [vmem:[%s267 + $0x50] sm:$0xff]
        %v321 = vld [vmem:[%s267 + $0x58] sm:$0xff]
        %v322 = vld [vmem:[%s267 + $0x60] sm:$0xff]
        %v323 = vld [vmem:[%s267 + $0x68] sm:$0xff]
        %v324 = vld [vmem:[%s267 + $0x70] sm:$0xff]
        %v325 = vld [vmem:[%s267 + $0x78] sm:$0xff]
        %326 = vmatprep.subr.mxu0 0.0
        %327 = vmatpush1.msra.mxu0 1.0
        %328 = vmatprep.subr.mxu0 0.0
        %329 = vmatpush1.msra.mxu0 1.0
        %330 = vmatprep.subr.mxu0 0.0
        %331 = vmatpush1.msra.mxu0 1.0
        %332 = vmatprep.subr.mxu0 0.0
        %333 = vmatpush1.msra.mxu0 1.0
        %334 = vmatprep.subr.mxu0 0.0
        %335 = vmatpush1.msra.mxu0 1.0
        %336 = vmatprep.subr.mxu0 0.0
        %337 = vmatpush1.msra.mxu0 1.0
        %338 = vmatprep.subr.mxu0 0.0
        %339 = vmatpush1.msra.mxu0 1.0
        %340 = vmatprep.subr.mxu0 0.0
        %341 = vmatpush1.msra.mxu0 1.0
        %342 = vmatprep.subr.mxu0 0.0
        %343 = vmatpush1.msra.mxu0 1.0
        %344 = vmatprep.subr.mxu0 0.0
        %345 = vmatpush1.msra.mxu0 1.0
        %346 = vmatprep.subr.mxu0 0.0
        %347 = vmatpush1.msra.mxu0 1.0
        %348 = vmatprep.subr.mxu0 0.0
        %349 = vmatpush1.msra.mxu0 1.0
        %350 = vmatprep.subr.mxu0 0.0
        %351 = vmatpush1.msra.mxu0 1.0
        %352 = vmatprep.subr.mxu0 0.0
        %353 = vmatpush1.msra.mxu0 1.0
        %354 = vmatprep.subr.mxu0 0.0
        %355 = vmatpush1.msra.mxu0 1.0
        %356 = vmatprep.subr.mxu0 0.0
        %357 = vmatpush1.msra.mxu0 1.0
        %358 = vmatprep.subr.mxu0 0.0
        %359 = vmatpush2.msra.mxu0 1.0
        %360 = vmatprep.subr.mxu0 0.0
        %361 = vmatpush2.msra.mxu0 1.0
        %362 = vmatprep.subr.mxu0 0.0
        %363 = vmatpush2.msra.mxu0 1.0
        %364 = vmatprep.subr.mxu0 0.0
        %365 = vmatpush2.msra.mxu0 1.0
        %366 = vmatprep.subr.mxu0 0.0
        %367 = vmatpush2.msra.mxu0 1.0
        %368 = vmatprep.subr.mxu0 0.0
        %369 = vmatpush2.msra.mxu0 1.0
        %370 = vmatprep.subr.mxu0 0.0
        %371 = vmatpush2.msra.mxu0 1.0
        %372 = vmatprep.subr.mxu0 0.0
        %373 = vmatpush2.msra.mxu0 1.0
        %374 = vmatprep.subr.mxu0 0.0
        %375 = vmatpush2.msra.mxu0 1.0
        %376 = vmatprep.subr.mxu0 0.0
        %377 = vmatpush2.msra.mxu0 1.0
        %378 = vmatprep.subr.mxu0 0.0
        %379 = vmatpush2.msra.mxu0 1.0
        %380 = vmatprep.subr.mxu0 0.0
        %381 = vmatpush2.msra.mxu0 1.0
        %382 = vmatprep.subr.mxu0 0.0
        %383 = vmatpush2.msra.mxu0 1.0
        %384 = vmatprep.subr.mxu0 0.0
        %385 = vmatpush2.msra.mxu0 1.0
        %386 = vmatprep.subr.mxu0 0.0
        %387 = vmatpush2.msra.mxu0 1.0
        %388 = vmatprep.subr.mxu0 0.0
        %389 = vmatpush2.msra.mxu0 1.0
        %390 = vmatprep.mubr.f32.mxu0 %v311
        %391 = vmatmul.mubr.f32.gmra.mxu0 %v310
        %v392 = vpop.f32.mrf.mxu0
        %v393 = vadd.f32 0.0, %v392
        %v394 = vpop.f32.mrf.mxu0
        %395 = vmatprep.mubr.f32.mxu0 %v315
        %396 = vmatmul.mubr.f32.gmra.mxu0 %v314
        %v397 = vpop.f32.mrf.mxu0
        %v398 = vadd.f32 0.0, %v397
        %v399 = vpop.f32.mrf.mxu0
        %400 = vmatprep.mubr.f32.mxu0 %v319
        %401 = vmatmul.mubr.f32.gmra.mxu0 %v318
        %v402 = vpop.f32.mrf.mxu0
        %v403 = vadd.f32 0.0, %v402
        %v404 = vpop.f32.mrf.mxu0
        %405 = vmatprep.mubr.f32.mxu0 %v323
        %406 = vmatmul.mubr.f32.gmra.mxu0 %v322
        %v407 = vpop.f32.mrf.mxu0
        %v408 = vadd.f32 0.0, %v407
        %v409 = vpop.f32.mrf.mxu0
        %410 = vdwg.mxu0
        %411 = vmatprep.subr.mxu0 0.0
        %412 = vmatpush1.msra.mxu0 1.0
        %413 = vmatprep.subr.mxu0 0.0
        %414 = vmatpush1.msra.mxu0 1.0
        %415 = vmatprep.subr.mxu0 0.0
        %416 = vmatpush1.msra.mxu0 1.0
        %417 = vmatprep.subr.mxu0 0.0
        %418 = vmatpush1.msra.mxu0 1.0
        %419 = vmatprep.subr.mxu0 0.0
        %420 = vmatpush1.msra.mxu0 1.0
        %421 = vmatprep.subr.mxu0 0.0
        %422 = vmatpush1.msra.mxu0 1.0
        %423 = vmatprep.subr.mxu0 0.0
        %424 = vmatpush1.msra.mxu0 1.0
        %425 = vmatprep.subr.mxu0 0.0
        %426 = vmatpush1.msra.mxu0 1.0
        %427 = vmatprep.subr.mxu0 0.0
        %428 = vmatpush1.msra.mxu0 1.0
        %429 = vmatprep.subr.mxu0 0.0
        %430 = vmatpush1.msra.mxu0 1.0
        %431 = vmatprep.subr.mxu0 0.0
        %432 = vmatpush1.msra.mxu0 1.0
        %433 = vmatprep.subr.mxu0 0.0
        %434 = vmatpush1.msra.mxu0 1.0
        %435 = vmatprep.subr.mxu0 0.0
        %436 = vmatpush1.msra.mxu0 1.0
        %437 = vmatprep.subr.mxu0 0.0
        %438 = vmatpush1.msra.mxu0 1.0
        %439 = vmatprep.subr.mxu0 0.0
        %440 = vmatpush1.msra.mxu0 1.0
        %441 = vmatprep.subr.mxu0 0.0
        %442 = vmatpush1.msra.mxu0 1.0
        %443 = vmatprep.subr.mxu0 0.0
        %444 = vmatpush2.msra.mxu0 1.0
        %445 = vmatprep.subr.mxu0 0.0
        %446 = vmatpush2.msra.mxu0 1.0
        %447 = vmatprep.subr.mxu0 0.0
        %448 = vmatpush2.msra.mxu0 1.0
        %449 = vmatprep.subr.mxu0 0.0
        %450 = vmatpush2.msra.mxu0 1.0
        %451 = vmatprep.subr.mxu0 0.0
        %452 = vmatpush2.msra.mxu0 1.0
        %453 = vmatprep.subr.mxu0 0.0
        %454 = vmatpush2.msra.mxu0 1.0
        %455 = vmatprep.subr.mxu0 0.0
        %456 = vmatpush2.msra.mxu0 1.0
        %457 = vmatprep.subr.mxu0 0.0
        %458 = vmatpush2.msra.mxu0 1.0
        %459 = vmatprep.subr.mxu0 0.0
        %460 = vmatpush2.msra.mxu0 1.0
        %461 = vmatprep.subr.mxu0 0.0
        %462 = vmatpush2.msra.mxu0 1.0
        %463 = vmatprep.subr.mxu0 0.0
        %464 = vmatpush2.msra.mxu0 1.0
        %465 = vmatprep.subr.mxu0 0.0
        %466 = vmatpush2.msra.mxu0 1.0
        %467 = vmatprep.subr.mxu0 0.0
        %468 = vmatpush2.msra.mxu0 1.0
        %469 = vmatprep.subr.mxu0 0.0
        %470 = vmatpush2.msra.mxu0 1.0
        %471 = vmatprep.subr.mxu0 0.0
        %472 = vmatpush2.msra.mxu0 1.0
        %473 = vmatprep.subr.mxu0 0.0
        %474 = vmatpush2.msra.mxu0 1.0
        %475 = vmatprep.mubr.f32.mxu0 %v313
        %476 = vmatmul.mubr.f32.gmra.mxu0 %v312
        %v477 = vpop.f32.mrf.mxu0
        %v478 = vadd.f32 %v393, %v477
        %v479 = vpop.f32.mrf.mxu0
        %480 = vmatprep.mubr.f32.mxu0 %v317
        %481 = vmatmul.mubr.f32.gmra.mxu0 %v316
        %v482 = vpop.f32.mrf.mxu0
        %v483 = vadd.f32 %v398, %v482
        %v484 = vpop.f32.mrf.mxu0
        %485 = vmatprep.mubr.f32.mxu0 %v321
        %486 = vmatmul.mubr.f32.gmra.mxu0 %v320
        %v487 = vpop.f32.mrf.mxu0
        %v488 = vadd.f32 %v403, %v487
        %v489 = vpop.f32.mrf.mxu0
        %490 = vmatprep.mubr.f32.mxu0 %v325
        %491 = vmatmul.mubr.f32.gmra.mxu0 %v324
        %v492 = vpop.f32.mrf.mxu0
        %v493 = vadd.f32 %v408, %v492
        %v494 = vpop.f32.mrf.mxu0
        %495 = vdwg.mxu0
        %v496 = vmul.f32 %v478, 0.001953125
        %v497 = vmul.f32 %v483, 0.001953125
        %v498 = vmul.f32 %v488, 0.001953125
        %v499 = vmul.f32 %v493, 0.001953125
        %v500 = vld [vmem:[%s2] sm:$0xf]
        %v501 = vld [vmem:[%s3] sm:$0xf]
        %vm502 = vcmask 261120
        %v504 = vsel %vm502, %v500, 0
        %506 = vmatprep.subr.mxu0 0.0
        %507 = vmatpush1.msra.mxu0 0.0
        %508 = vmatprep.subr.mxu0 0.0
        %509 = vmatpush1.msra.mxu0 0.0
        %510 = vmatprep.subr.mxu0 0.0
        %511 = vmatpush1.msra.mxu0 0.0
        %512 = vmatprep.subr.mxu0 0.0
        %513 = vmatpush1.msra.mxu0 0.0
        %514 = vmatprep.subr.mxu0 0.0
        %515 = vmatpush1.msra.mxu0 0.0
        %516 = vmatprep.subr.mxu0 0.0
        %517 = vmatpush1.msra.mxu0 0.0
        %518 = vmatprep.subr.mxu0 0.0
        %519 = vmatpush1.msra.mxu0 0.0
        %520 = vmatprep.subr.mxu0 0.0
        %521 = vmatpush1.msra.mxu0 0.0
        %522 = vmatprep.subr.mxu0 0.0
        %523 = vmatpush1.msra.mxu0 0.0
        %524 = vmatprep.subr.mxu0 0.0
        %525 = vmatpush1.msra.mxu0 0.0
        %526 = vmatprep.subr.mxu0 0.0
        %527 = vmatpush1.msra.mxu0 0.0
        %528 = vmatprep.subr.mxu0 0.0
        %529 = vmatpush1.msra.mxu0 0.0
        %530 = vmatprep.subr.mxu0 0.0
        %531 = vmatpush1.msra.mxu0 %v499
        %532 = vmatprep.subr.mxu0 0.0
        %533 = vmatpush1.msra.mxu0 %v498
        %534 = vmatprep.subr.mxu0 0.0
        %535 = vmatpush1.msra.mxu0 %v497
        %536 = vmatprep.subr.mxu0 0.0
        %537 = vmatpush1.msra.mxu0 %v496
        %538 = vmatprep.subr.mxu0 0.0
        %539 = vmatpush2.msra.mxu0 0.0
        %540 = vmatprep.subr.mxu0 0.0
        %541 = vmatpush2.msra.mxu0 0.0
        %542 = vmatprep.subr.mxu0 0.0
        %543 = vmatpush2.msra.mxu0 0.0
        %544 = vmatprep.subr.mxu0 0.0
        %545 = vmatpush2.msra.mxu0 0.0
        %546 = vmatprep.subr.mxu0 0.0
        %547 = vmatpush2.msra.mxu0 0.0
        %548 = vmatprep.subr.mxu0 0.0
        %549 = vmatpush2.msra.mxu0 0.0
        %550 = vmatprep.subr.mxu0 0.0
        %551 = vmatpush2.msra.mxu0 0.0
        %552 = vmatprep.subr.mxu0 0.0
        %553 = vmatpush2.msra.mxu0 0.0
        %554 = vmatprep.subr.mxu0 0.0
        %555 = vmatpush2.msra.mxu0 0.0
        %556 = vmatprep.subr.mxu0 0.0
        %557 = vmatpush2.msra.mxu0 0.0
        %558 = vmatprep.subr.mxu0 0.0
        %559 = vmatpush2.msra.mxu0 0.0
        %560 = vmatprep.subr.mxu0 0.0
        %561 = vmatpush2.msra.mxu0 0.0
        %562 = vmatprep.subr.mxu0 0.0
        %563 = vmatpush2.msra.mxu0 0.0
        %564 = vmatprep.subr.mxu0 0.0
        %565 = vmatpush2.msra.mxu0 0.0
        %566 = vmatprep.subr.mxu0 0.0
        %567 = vmatpush2.msra.mxu0 0.0
        %568 = vmatprep.subr.mxu0 0.0
        %569 = vmatpush2.msra.mxu0 0.0
        %570 = vmatprep.mubr.f32.mxu0 0.0
        %571 = vmatmul.mubr.f32.gmra.mxu0 %v504
        %v572 = vpop.f32.mrf.mxu0
        %v573 = vadd.f32 %v501, %v572
        %v574 = vpop.f32.mrf.mxu0
        %575 = vdwg.mxu0
        %vm576 = vcmp.gt.f32.partialorder %v573, 0.0
        %v577 = vmul.f32 %v573, 0.01
        %v578 = vsel %vm576, %v573, %v577
        %v579 = vld [vmem:[%s4] sm:$0xff]
        %v580 = vld [vmem:[%s4 + $0x8] sm:$0xff]
        %v581 = vld [vmem:[%s4 + $0x10] sm:$0xff]
        %v582 = vld [vmem:[%s4 + $0x18] sm:$0xff]
        %v583 = vld [vmem:[%s5] sm:$0xff]
        %v584 = vld [vmem:[%s5 + $0x8] sm:$0xff]
        %v585 = vld [vmem:[%s5 + $0x10] sm:$0xff]
        %v586 = vld [vmem:[%s5 + $0x18] sm:$0xff]
        %vm587 = vcmask 31744
        %v589 = vsel %vm587, %v579, 0
        %v592 = vsel %vm587, %v580, 0
        %v595 = vsel %vm587, %v581, 0
        %v598 = vsel %vm587, %v582, 0
        %vm600 = vcmask 1043456
        %v602 = vsel %vm600, %v578, 0
        %604 = vmatprep.subr.mxu0 0.0
        %605 = vmatpush1.msra.mxu0 0.0
        %606 = vmatprep.subr.mxu0 0.0
        %607 = vmatpush1.msra.mxu0 0.0
        %608 = vmatprep.subr.mxu0 0.0
        %609 = vmatpush1.msra.mxu0 0.0
        %610 = vmatprep.subr.mxu0 0.0
        %611 = vmatpush1.msra.mxu0 0.0
        %612 = vmatprep.subr.mxu0 0.0
        %613 = vmatpush1.msra.mxu0 0.0
        %614 = vmatprep.subr.mxu0 0.0
        %615 = vmatpush1.msra.mxu0 0.0
        %616 = vmatprep.subr.mxu0 0.0
        %617 = vmatpush1.msra.mxu0 0.0
        %618 = vmatprep.subr.mxu0 0.0
        %619 = vmatpush1.msra.mxu0 0.0
        %620 = vmatprep.subr.mxu0 0.0
        %621 = vmatpush1.msra.mxu0 0.0
        %622 = vmatprep.subr.mxu0 0.0
        %623 = vmatpush1.msra.mxu0 0.0
        %624 = vmatprep.subr.mxu0 0.0
        %625 = vmatpush1.msra.mxu0 0.0
        %626 = vmatprep.subr.mxu0 0.0
        %627 = vmatpush1.msra.mxu0 0.0
        %628 = vmatprep.subr.mxu0 0.0
        %629 = vmatpush1.msra.mxu0 0.0
        %630 = vmatprep.subr.mxu0 0.0
        %631 = vmatpush1.msra.mxu0 0.0
        %632 = vmatprep.subr.mxu0 0.0
        %633 = vmatpush1.msra.mxu0 0.0
        %634 = vmatprep.subr.mxu0 0.0
        %635 = vmatpush1.msra.mxu0 %v602
        %636 = vmatprep.subr.mxu0 0.0
        %637 = vmatpush2.msra.mxu0 0.0
        %638 = vmatprep.subr.mxu0 0.0
        %639 = vmatpush2.msra.mxu0 0.0
        %640 = vmatprep.subr.mxu0 0.0
        %641 = vmatpush2.msra.mxu0 0.0
        %642 = vmatprep.subr.mxu0 0.0
        %643 = vmatpush2.msra.mxu0 0.0
        %644 = vmatprep.subr.mxu0 0.0
        %645 = vmatpush2.msra.mxu0 0.0
        %646 = vmatprep.subr.mxu0 0.0
        %647 = vmatpush2.msra.mxu0 0.0
        %648 = vmatprep.subr.mxu0 0.0
        %649 = vmatpush2.msra.mxu0 0.0
        %650 = vmatprep.subr.mxu0 0.0
        %651 = vmatpush2.msra.mxu0 0.0
        %652 = vmatprep.subr.mxu0 0.0
        %653 = vmatpush2.msra.mxu0 0.0
        %654 = vmatprep.subr.mxu0 0.0
        %655 = vmatpush2.msra.mxu0 0.0
        %656 = vmatprep.subr.mxu0 0.0
        %657 = vmatpush2.msra.mxu0 0.0
        %658 = vmatprep.subr.mxu0 0.0
        %659 = vmatpush2.msra.mxu0 0.0
        %660 = vmatprep.subr.mxu0 0.0
        %661 = vmatpush2.msra.mxu0 0.0
        %662 = vmatprep.subr.mxu0 0.0
        %663 = vmatpush2.msra.mxu0 0.0
        %664 = vmatprep.subr.mxu0 0.0
        %665 = vmatpush2.msra.mxu0 0.0
        %666 = vmatprep.subr.mxu0 0.0
        %667 = vmatpush2.msra.mxu0 0.0
        %668 = vmatprep.mubr.f32.mxu0 0.0
        %669 = vmatmul.mubr.f32.gmra.mxu0 %v589
        %v670 = vpop.f32.mrf.mxu0
        %v671 = vadd.f32 %v583, %v670
        %v672 = vpop.f32.mrf.mxu0
        %673 = vmatprep.mubr.f32.mxu0 0.0
        %674 = vmatmul.mubr.f32.gmra.mxu0 %v592
        %v675 = vpop.f32.mrf.mxu0
        %v676 = vadd.f32 %v584, %v675
        %v677 = vpop.f32.mrf.mxu0
        %678 = vmatprep.mubr.f32.mxu0 0.0
        %679 = vmatmul.mubr.f32.gmra.mxu0 %v595
        %v680 = vpop.f32.mrf.mxu0
        %v681 = vadd.f32 %v585, %v680
        %v682 = vpop.f32.mrf.mxu0
        %683 = vmatprep.mubr.f32.mxu0 0.0
        %684 = vmatmul.mubr.f32.gmra.mxu0 %v598
        %v685 = vpop.f32.mrf.mxu0
        %v686 = vadd.f32 %v586, %v685
        %v687 = vpop.f32.mrf.mxu0
        %688 = vdwg.mxu0
        %v689 = vsub.f32 0.0, %v671
        %v690 = vsub.f32 0.0, %v676
        %v691 = vsub.f32 0.0, %v681
        %v692 = vsub.f32 0.0, %v686
        %v693 = vmul.f32 %v689, 1.442695
        %v694 = vpow.pop %v693
        %v695 = vmul.f32 %v690, 1.442695
        %v696 = vpow.pop %v695
        %v697 = vmul.f32 %v691, 1.442695
        %v698 = vpow.pop %v697
        %v699 = vmul.f32 %v692, 1.442695
        %v700 = vpow.pop %v699
        %v701 = vadd.f32 %v694, 1.0
        %v702 = vadd.f32 %v696, 1.0
        %v703 = vadd.f32 %v698, 1.0
        %v704 = vadd.f32 %v700, 1.0
        %v705 = vrcp.pop %v701
        %v706 = vrcp.pop %v702
        %v707 = vrcp.pop %v703
        %v708 = vrcp.pop %v704
        %710 = vset.pattern.permute.xlu0 0
        %711 = vperm.xlu0 %710, %v705
        %v712 = vpop.permute.xlu0 %711
        %715 = vset.pattern.permute.xlu0 0
        %716 = vperm.xlu0 %715, %v706
        %v717 = vpop.permute.xlu0 %716
        %720 = vset.pattern.permute.xlu0 0
        %721 = vperm.xlu0 %720, %v707
        %v722 = vpop.permute.xlu0 %721
        %725 = vset.pattern.permute.xlu0 0
        %726 = vperm.xlu0 %725, %v708
        %v727 = vpop.permute.xlu0 %726
        %v729 = vmul.f32 %v310, %v712
        %v730 = vmul.f32 %v311, %v712
        %v731 = vmul.f32 %v312, %v712
        %v732 = vmul.f32 %v313, %v712
        %v733 = vmul.f32 %v314, %v717
        %v734 = vmul.f32 %v315, %v717
        %v735 = vmul.f32 %v316, %v717
        %v736 = vmul.f32 %v317, %v717
        %v737 = vmul.f32 %v318, %v722
        %v738 = vmul.f32 %v319, %v722
        %v739 = vmul.f32 %v320, %v722
        %v740 = vmul.f32 %v321, %v722
        %v741 = vmul.f32 %v322, %v727
        %v742 = vmul.f32 %v323, %v727
        %v743 = vmul.f32 %v324, %v727
        %v744 = vmul.f32 %v325, %v727
        %v745 = vld [vmem:[%s276] sm:$0xff]
        %v746 = vld [vmem:[%s276 + $0x8] sm:$0xff]
        %v747 = vld [vmem:[%s276 + $0x10] sm:$0xff]
        %v748 = vld [vmem:[%s276 + $0x18] sm:$0xff]
        %v749 = vld [vmem:[%s276 + $0x20] sm:$0xff]
        %v750 = vld [vmem:[%s276 + $0x28] sm:$0xff]
        %v751 = vld [vmem:[%s276 + $0x30] sm:$0xff]
        %v752 = vld [vmem:[%s276 + $0x38] sm:$0xff]
        %v753 = vld [vmem:[%s276 + $0x40] sm:$0xff]
        %v754 = vld [vmem:[%s276 + $0x48] sm:$0xff]
        %v755 = vld [vmem:[%s276 + $0x50] sm:$0xff]
        %v756 = vld [vmem:[%s276 + $0x58] sm:$0xff]
        %v757 = vld [vmem:[%s276 + $0x60] sm:$0xff]
        %v758 = vld [vmem:[%s276 + $0x68] sm:$0xff]
        %v759 = vld [vmem:[%s276 + $0x70] sm:$0xff]
        %v760 = vld [vmem:[%s276 + $0x78] sm:$0xff]
        %v761 = vadd.f32 %v729, %v745
        %v762 = vadd.f32 %v730, %v746
        %v763 = vadd.f32 %v731, %v747
        %v764 = vadd.f32 %v732, %v748
        %v765 = vadd.f32 %v733, %v749
        %v766 = vadd.f32 %v734, %v750
        %v767 = vadd.f32 %v735, %v751
        %v768 = vadd.f32 %v736, %v752
        %v769 = vadd.f32 %v737, %v753
        %v770 = vadd.f32 %v738, %v754
        %v771 = vadd.f32 %v739, %v755
        %v772 = vadd.f32 %v740, %v756
        %v773 = vadd.f32 %v741, %v757
        %v774 = vadd.f32 %v742, %v758
        %v775 = vadd.f32 %v743, %v759
        %v776 = vadd.f32 %v744, %v760
        %777 = vst [vmem:[%s309] sm:$0xff] %v761
        %778 = vst [vmem:[%s309 + $0x8] sm:$0xff] %v762
        %779 = vst [vmem:[%s309 + $0x10] sm:$0xff] %v763
        %780 = vst [vmem:[%s309 + $0x18] sm:$0xff] %v764
        %781 = vst [vmem:[%s309 + $0x20] sm:$0xff] %v765
        %782 = vst [vmem:[%s309 + $0x28] sm:$0xff] %v766
        %783 = vst [vmem:[%s309 + $0x30] sm:$0xff] %v767
        %784 = vst [vmem:[%s309 + $0x38] sm:$0xff] %v768
        %785 = vst [vmem:[%s309 + $0x40] sm:$0xff] %v769
        %786 = vst [vmem:[%s309 + $0x48] sm:$0xff] %v770
        %787 = vst [vmem:[%s309 + $0x50] sm:$0xff] %v771
        %788 = vst [vmem:[%s309 + $0x58] sm:$0xff] %v772
        %789 = vst [vmem:[%s309 + $0x60] sm:$0xff] %v773
        %790 = vst [vmem:[%s309 + $0x68] sm:$0xff] %v774
        %791 = vst [vmem:[%s309 + $0x70] sm:$0xff] %v775
        %792 = vst [vmem:[%s309 + $0x78] sm:$0xff] %v776
        %s793 = sand.u32 %s170, 1
        %s794 = scalar_lea.sflag [#allocation4], %s793
        %s795 = sand.u32 %s170, 1
        %s796 = smul.addr %s795, 128
        %s797 = scalar_lea.vmem [#allocation7], %s796
        // Predicated region
        $region53: #{tpu_custom_call.1} parent=43 // pred_check
          %p798 = pneg %p180
        $region54: #{tpu_custom_call.1} parent=43 // pred_check_branch
          %800 = sbr.rel (%p798) target = $region56
        $region55: #{tpu_custom_call.1} parent=43 // pred_region
          %s802 = ssub.s32 2048, 2048
          %803 = vsyncadd %s794, %s802
          %s804 = smul.addr %s26, 16
          %s805 = smul.addr %s804, 128
          %s806 = scalar_lea.hbm %s6, %s805
          %s807 = sshll.u32 %s797, 4
          %s808 = int_to_ptr.vmem [resolvable:$true] %s807
          %813 = dma.vmem_to_hbm [thread:$0]  %s808, 2048, %s806, %s794, 512, 512, 32
        $region56: #{tpu_custom_call.1} parent=43 // pred_fallthru
          _
      $region44: #{tpu_custom_call.1} parent=5 // pred_fallthru
        _
      %p814 = scmp.le.s32.totalorder 2, %s21
      // Predicated region
      $region57: #{tpu_custom_call.1} parent=5 // pred_check
        %p815 = pneg %p814
      $region58: #{tpu_custom_call.1} parent=5 // pred_check_branch
        %817 = sbr.rel (%p815) target = $region60
      $region59: #{tpu_custom_call.1} parent=5 // pred_region
        %s818 = ssub.s32 %s21, 2
        // Predicated region
        $region61: #{tpu_custom_call.1} parent=59 // pred_check
          %p819 = pneg %p186
        $region62: #{tpu_custom_call.1} parent=59 // pred_check_branch
          %821 = sbr.rel (%p819) target = $region64
        $region63: #{tpu_custom_call.1} parent=59 // pred_region
          %s822 = sand.u32 %s171, 1
          %s823 = scalar_lea.sflag [#allocation4], %s822
          %s824 = sand.u32 %s171, 1
          %s825 = smul.addr %s824, 128
          %s826 = scalar_lea.vmem [#allocation7], %s825
          %827 = dma.done %s823, 2048
        $region64: #{tpu_custom_call.1} parent=59 // pred_fallthru
          _
      $region60: #{tpu_custom_call.1} parent=5 // pred_fallthru
        _
    $region6: #{tpu_custom_call.1} parent=1 // loop_footer
      %s25 = sadd.s32 1, %s21
    $region7: #{tpu_custom_call.1} parent=1 // loop_footer_branch
      %20 = sbr.rel target = $region3
    $region8: #{tpu_custom_call.1} parent=1 // loop_exit
      _
    %828 = vsyncpa [#allocation3], 1
    %s829 = scalar_lea.sflag [#allocation3], 1
    %830 = vsyncpa %s829, 1
    %831 = vsyncpa [#allocation6], 1
    %s832 = scalar_lea.sflag [#allocation6], 1
    %833 = vsyncpa %s832, 1
    %834 = vsyncpa [#allocation4], 1
    %s835 = scalar_lea.sflag [#allocation4], 1
    %836 = vsyncpa %s835, 1

</llo_original>
